<compile_context>
chip_gen: v7x
topology: tpu7x:2x2x1
jax: 0.10.0
libtpu: 0.0.40
codegen_flags: <defaults>
</compile_context>

<pallas_src>
import jax
import jax.numpy as jnp
from jax import lax
from jax.experimental import pallas as pl
from jax.experimental.pallas import tpu as pltpu

_INV_SQRT2 = 0.7071067811865476
_SUB = 16          # row granularity: bf16 sublane packing is 16 rows/vreg


def _round_up(x, m):
    return ((x + m - 1) // m) * m


def _gelu_exact(x):
    # PyTorch nn.GELU() default = exact erf-based GELU (kept in f32).
    return 0.5 * x * (1.0 + lax.erf(x * _INV_SQRT2))


# ----------------------------------------------------------------------------
# Kernel: fused 3-layer MLP on one batch tile.  All weights are VMEM-resident.
# ----------------------------------------------------------------------------
def ntp_head_kernel(t1_ref, t2_ref, w1a_ref, w1b_ref, b1_ref,
                    w2_ref, b2_ref, w3_ref, b3_ref, o_ref):
    # Linear 1: split-K replaces the torch.cat (t1 @ W1a + t2 @ W1b + b1).
    # bf16 operands, f32 MXU accumulation, f32 bias/GELU.  Dropout = identity.
    # TODO(synk): on v6e/v7x, staging [t1|t2] into one (TB, 2*d_model) VMEM
    # scratch would merge these two K=d_model pushes into one (low priority).
    h = (jnp.dot(t1_ref[...], w1a_ref[...], preferred_element_type=jnp.float32)
         + jnp.dot(t2_ref[...], w1b_ref[...], preferred_element_type=jnp.float32)
         + b1_ref[...])
    h = _gelu_exact(h)

    # Linear 2 + exact GELU.
    h = jnp.dot(h.astype(jnp.bfloat16), w2_ref[...],
                preferred_element_type=jnp.float32) + b2_ref[...]
    h = _gelu_exact(h)

    # Linear 3 -> (TB, 2) logits, stored directly (no lane padding).
    logits = jnp.dot(h.astype(jnp.bfloat16), w3_ref[...],
                     preferred_element_type=jnp.float32) + b3_ref[...]
    o_ref[...] = logits.astype(o_ref.dtype)


# ----------------------------------------------------------------------------
# Tiling helpers
# ----------------------------------------------------------------------------
def _budget_tb(d_model, tb, weight_bytes, budget_bytes=12 << 20):
    """Cap TB so double-buffered bf16 inputs + f32 output + (2x) resident
    weights stay under ~12 MiB (inside v5e's 16 MiB scoped-VMEM default)."""
    per_row = 2 * d_model * 2 * 2 + 2 * 4 * 2     # 2 bf16 inputs (dbuf) + f32 out (dbuf)
    avail = max(budget_bytes - 2 * weight_bytes, 1 << 20)
    cap = max(_SUB, (avail // per_row) // _SUB * _SUB)
    return max(_SUB, min(tb, cap))


def _choose_tiles(B, tb):
    """Pick (TB, n_tiles) with minimal batch padding and >= 2 grid steps
    whenever B allows it (so both v7x TensorCores get work)."""
    if B <= _SUB:
        return _round_up(max(B, 1), _SUB), 1
    n = max(2, pl.cdiv(B, tb))
    TB = _round_up(pl.cdiv(B, n), _SUB)
    n = max(2, pl.cdiv(B, TB))
    return TB, n


# ----------------------------------------------------------------------------
# Wrapper
# ----------------------------------------------------------------------------
def ntp_head_forward(track1, track2, prepped_params, *, tb=1024):
    """track1, track2: (B, d_model) float32.  Returns (B, 2) f32 logits."""
    B, d_model = track1.shape
    weights = list(prepped_params)               # w1a, w1b, b1, w2, b2, w3, b3
    out_dim = weights[5].shape[1]                # 2

    weight_bytes = sum(int(a.size) * a.dtype.itemsize for a in weights)
    TB, n_tiles = _choose_tiles(B, _budget_tb(d_model, tb, weight_bytes))
    Bp = TB * n_tiles

    # bf16 inputs: halves input HBM DMA; matmuls accumulate in f32.
    t1 = track1.astype(jnp.bfloat16)
    t2 = track2.astype(jnp.bfloat16)
    if Bp != B:
        pad = ((0, Bp - B), (0, 0))
        t1 = jnp.pad(t1, pad)
        t2 = jnp.pad(t2, pad)

    x_spec = pl.BlockSpec((TB, d_model), lambda i: (i, 0))
    out_spec = pl.BlockSpec((TB, out_dim), lambda i: (i, 0))

    def resident(a, single_buffer):
        idx = lambda i, nd=a.ndim: (0,) * nd
        if single_buffer:
            # Block index never changes -> one VMEM buffer is enough.
            return pl.BlockSpec(a.shape, idx, pipeline_mode=pl.Buffered(1))
        return pl.BlockSpec(a.shape, idx)

    def run(single_buffer):
        in_specs = [x_spec, x_spec] + [resident(a, single_buffer) for a in weights]
        return pl.pallas_call(
            ntp_head_kernel,
            out_shape=jax.ShapeDtypeStruct((Bp, out_dim), jnp.float32),
            grid=(n_tiles,),
            in_specs=in_specs,
            out_specs=out_spec,
            compiler_params=pltpu.CompilerParams(
                dimension_semantics=("parallel",),
                vmem_limit_bytes=32 * 1024 * 1024),
        )(t1, t2, *weights)

    try:
        out = run(True)
    except Exception:
        # pl.Buffered(1) unsupported on this jax build: fall back to default
        # double-buffering (constant index_map still avoids re-fetching).
        out = run(False)

    return out[:B]


# ----------------------------------------------------------------------------
# Parameter init / prep
# ----------------------------------------------------------------------------
def init_params(key, d_model, hidden_dim):
    """Deterministic synthetic params (f32, PyTorch-equivalent layout).
    Weights stored (in, out) so x @ W + b matches PyTorch's x @ W^T + b."""
    k1, k2, k3, k4, k5, k6 = jax.random.split(key, 6)
    d_in = d_model * 2
    h2 = hidden_dim // 2
    s1 = 1.0 / jnp.sqrt(d_in)
    s2 = 1.0 / jnp.sqrt(hidden_dim)
    s3 = 1.0 / jnp.sqrt(h2)
    w1 = jax.random.uniform(k1, (d_in, hidden_dim), jnp.float32, -s1, s1)
    b1 = jax.random.uniform(k2, (1, hidden_dim), jnp.float32, -s1, s1)
    w2 = jax.random.uniform(k3, (hidden_dim, h2), jnp.float32, -s2, s2)
    b2 = jax.random.uniform(k4, (1, h2), jnp.float32, -s2, s2)
    w3 = jax.random.uniform(k5, (h2, 2), jnp.float32, -s3, s3)
    b3 = jax.random.uniform(k6, (1, 2), jnp.float32, -s3, s3)
    return (w1, b1, w2, b2, w3, b3)


def prep_params(params, d_model):
    """Split w1 into (track1, track2) halves (removes the concat) and cast
    the weight matrices to bf16 for the MXU; biases stay f32."""
    w1, b1, w2, b2, w3, b3 = params
    bf = jnp.bfloat16
    return (w1[:d_model].astype(bf), w1[d_model:].astype(bf),
            b1.astype(jnp.float32),
            w2.astype(bf), b2.astype(jnp.float32),
            w3.astype(bf), b3.astype(jnp.float32))


def ntp_head_reference(track1, track2, params, *, bf16_matmul):
    """Pure-JAX reference.  bf16_matmul=True mirrors the kernel's numerics;
    False is the exact f32 PyTorch-equivalent forward."""
    w1, b1, w2, b2, w3, b3 = params
    if bf16_matmul:
        d = track1.shape[1]
        bf = jnp.bfloat16
        h = (jnp.dot(track1.astype(bf), w1[:d].astype(bf),
                     preferred_element_type=jnp.float32)
             + jnp.dot(track2.astype(bf), w1[d:].astype(bf),
                       preferred_element_type=jnp.float32) + b1)
        h = _gelu_exact(h)
        h = jnp.dot(h.astype(bf), w2.astype(bf),
                    preferred_element_type=jnp.float32) + b2
        h = _gelu_exact(h)
        return jnp.dot(h.astype(bf), w3.astype(bf),
                       preferred_element_type=jnp.float32) + b3
    x = jnp.concatenate([track1, track2], axis=-1)
    h = _gelu_exact(x @ w1 + b1)
    h = _gelu_exact(h @ w2 + b2)
    return h @ w3 + b3


if __name__ == "__main__":
    B, D_MODEL, HIDDEN = 2, 32, 32

    key = jax.random.PRNGKey(0)
    kp, kx1, kx2 = jax.random.split(key, 3)
    params = init_params(kp, D_MODEL, HIDDEN)
    prepped = prep_params(params, D_MODEL)
    track1 = jax.random.normal(kx1, (B, D_MODEL), jnp.float32)
    track2 = jax.random.normal(kx2, (B, D_MODEL), jnp.float32)

    logits = jax.block_until_ready(ntp_head_forward(track1, track2, prepped))
    assert logits.shape == (B, 2), logits.shape

    ref_bf16 = jax.block_until_ready(
        ntp_head_reference(track1, track2, params, bf16_matmul=True))
    ref_f32 = jax.block_until_ready(
        ntp_head_reference(track1, track2, params, bf16_matmul=False))
    # Tight check vs a reference with identical bf16-matmul numerics.
    assert jnp.allclose(logits, ref_bf16, atol=1e-4, rtol=1e-4), (logits, ref_bf16)
    # Loose sanity check vs the exact f32 PyTorch-equivalent forward.
    assert jnp.allclose(logits, ref_f32, atol=3e-2, rtol=3e-2), (logits, ref_f32)

    print("KERNEL_OK")
</pallas_src>

<mosaic_0001>
module attributes {stable_mosaic.version = 11 : i64} {
  func.func @ntp_head_kernel(%arg0: i32, %arg1: memref<16x32xbf16, #tpu.memory_space<vmem>>, %arg2: memref<16x32xbf16, #tpu.memory_space<vmem>>, %arg3: memref<32x32xbf16, #tpu.memory_space<vmem>>, %arg4: memref<32x32xbf16, #tpu.memory_space<vmem>>, %arg5: memref<1x32xf32, #tpu.memory_space<vmem>>, %arg6: memref<32x16xbf16, #tpu.memory_space<vmem>>, %arg7: memref<1x16xf32, #tpu.memory_space<vmem>>, %arg8: memref<16x2xbf16, #tpu.memory_space<vmem>>, %arg9: memref<1x2xf32, #tpu.memory_space<vmem>>, %arg10: memref<16x2xf32, #tpu.memory_space<vmem>>) attributes {dimension_semantics = [#tpu.dimension_semantics<parallel>], iteration_bounds = array<i64: 1>, scalar_prefetch = 0 : i64, scratch_operands = 0 : i64, tpu.core_type = #tpu.core_type<tc>, window_params = [{transform_indices = @transform_0, window_bounds = array<i64: 16, 32>}, {transform_indices = @transform_1, window_bounds = array<i64: 16, 32>}, {pipeline_mode = #tpu.pipeline_mode<synchronous>, transform_indices = @transform_2, window_bounds = array<i64: 32, 32>}, {pipeline_mode = #tpu.pipeline_mode<synchronous>, transform_indices = @transform_3, window_bounds = array<i64: 32, 32>}, {pipeline_mode = #tpu.pipeline_mode<synchronous>, transform_indices = @transform_4, window_bounds = array<i64: 1, 32>}, {pipeline_mode = #tpu.pipeline_mode<synchronous>, transform_indices = @transform_5, window_bounds = array<i64: 32, 16>}, {pipeline_mode = #tpu.pipeline_mode<synchronous>, transform_indices = @transform_6, window_bounds = array<i64: 1, 16>}, {pipeline_mode = #tpu.pipeline_mode<synchronous>, transform_indices = @transform_7, window_bounds = array<i64: 16, 2>}, {pipeline_mode = #tpu.pipeline_mode<synchronous>, transform_indices = @transform_8, window_bounds = array<i64: 1, 2>}, {transform_indices = @transform_9, window_bounds = array<i64: 16, 2>}]} {
    %c0 = arith.constant 0 : index
    %c0_0 = arith.constant 0 : index
    %0 = vector.load %arg1[%c0, %c0_0] : memref<16x32xbf16, #tpu.memory_space<vmem>>, vector<16x32xbf16>
    %c0_1 = arith.constant 0 : index
    %c0_2 = arith.constant 0 : index
    %1 = vector.load %arg3[%c0_1, %c0_2] : memref<32x32xbf16, #tpu.memory_space<vmem>>, vector<32x32xbf16>
    %cst = arith.constant dense<0.000000e+00> : vector<16x32xf32>
    %2 = tpu.matmul %0, %1, %cst {dimension_numbers = #tpu.dot_dimension_numbers<[1], [0], [0], [1], [0, 0, 1, 1], [], []>} : vector<16x32xbf16>, vector<32x32xbf16>, vector<16x32xf32> -> vector<16x32xf32>
    %c0_3 = arith.constant 0 : index
    %c0_4 = arith.constant 0 : index
    %3 = vector.load %arg2[%c0_3, %c0_4] : memref<16x32xbf16, #tpu.memory_space<vmem>>, vector<16x32xbf16>
    %c0_5 = arith.constant 0 : index
    %c0_6 = arith.constant 0 : index
    %4 = vector.load %arg4[%c0_5, %c0_6] : memref<32x32xbf16, #tpu.memory_space<vmem>>, vector<32x32xbf16>
    %cst_7 = arith.constant dense<0.000000e+00> : vector<16x32xf32>
    %5 = tpu.matmul %3, %4, %cst_7 {dimension_numbers = #tpu.dot_dimension_numbers<[1], [0], [0], [1], [0, 0, 1, 1], [], []>} : vector<16x32xbf16>, vector<32x32xbf16>, vector<16x32xf32> -> vector<16x32xf32>
    %6 = arith.addf %2, %5 : vector<16x32xf32>
    %c0_8 = arith.constant 0 : index
    %c0_9 = arith.constant 0 : index
    %7 = vector.load %arg5[%c0_8, %c0_9] : memref<1x32xf32, #tpu.memory_space<vmem>>, vector<1x32xf32>
    %8 = vector.broadcast %7 : vector<1x32xf32> to vector<16x32xf32>
    %9 = arith.addf %6, %8 : vector<16x32xf32>
    %cst_10 = arith.constant 5.000000e-01 : f32
    %10 = vector.broadcast %cst_10 : f32 to vector<16x32xf32>
    %11 = arith.mulf %10, %9 : vector<16x32xf32>
    %cst_11 = arith.constant 0.707106769 : f32
    %12 = vector.broadcast %cst_11 : f32 to vector<16x32xf32>
    %13 = arith.mulf %9, %12 : vector<16x32xf32>
    %14 = math.erf %13 : vector<16x32xf32>
    %cst_12 = arith.constant 1.000000e+00 : f32
    %15 = vector.broadcast %cst_12 : f32 to vector<16x32xf32>
    %16 = arith.addf %15, %14 : vector<16x32xf32>
    %17 = arith.mulf %11, %16 : vector<16x32xf32>
    %18 = arith.truncf %17 : vector<16x32xf32> to vector<16x32xbf16>
    %c0_13 = arith.constant 0 : index
    %c0_14 = arith.constant 0 : index
    %19 = vector.load %arg6[%c0_13, %c0_14] : memref<32x16xbf16, #tpu.memory_space<vmem>>, vector<32x16xbf16>
    %cst_15 = arith.constant dense<0.000000e+00> : vector<16x16xf32>
    %20 = tpu.matmul %18, %19, %cst_15 {dimension_numbers = #tpu.dot_dimension_numbers<[1], [0], [0], [1], [0, 0, 1, 1], [], []>} : vector<16x32xbf16>, vector<32x16xbf16>, vector<16x16xf32> -> vector<16x16xf32>
    %c0_16 = arith.constant 0 : index
    %c0_17 = arith.constant 0 : index
    %21 = vector.load %arg7[%c0_16, %c0_17] : memref<1x16xf32, #tpu.memory_space<vmem>>, vector<1x16xf32>
    %22 = vector.broadcast %21 : vector<1x16xf32> to vector<16x16xf32>
    %23 = arith.addf %20, %22 : vector<16x16xf32>
    %cst_18 = arith.constant 5.000000e-01 : f32
    %24 = vector.broadcast %cst_18 : f32 to vector<16x16xf32>
    %25 = arith.mulf %24, %23 : vector<16x16xf32>
    %cst_19 = arith.constant 0.707106769 : f32
    %26 = vector.broadcast %cst_19 : f32 to vector<16x16xf32>
    %27 = arith.mulf %23, %26 : vector<16x16xf32>
    %28 = math.erf %27 : vector<16x16xf32>
    %cst_20 = arith.constant 1.000000e+00 : f32
    %29 = vector.broadcast %cst_20 : f32 to vector<16x16xf32>
    %30 = arith.addf %29, %28 : vector<16x16xf32>
    %31 = arith.mulf %25, %30 : vector<16x16xf32>
    %32 = arith.truncf %31 : vector<16x16xf32> to vector<16x16xbf16>
    %c0_21 = arith.constant 0 : index
    %c0_22 = arith.constant 0 : index
    %33 = vector.load %arg8[%c0_21, %c0_22] : memref<16x2xbf16, #tpu.memory_space<vmem>>, vector<16x2xbf16>
    %cst_23 = arith.constant dense<0.000000e+00> : vector<16x2xf32>
    %34 = tpu.matmul %32, %33, %cst_23 {dimension_numbers = #tpu.dot_dimension_numbers<[1], [0], [0], [1], [0, 0, 1, 1], [], []>} : vector<16x16xbf16>, vector<16x2xbf16>, vector<16x2xf32> -> vector<16x2xf32>
    %c0_24 = arith.constant 0 : index
    %c0_25 = arith.constant 0 : index
    %35 = vector.load %arg9[%c0_24, %c0_25] : memref<1x2xf32, #tpu.memory_space<vmem>>, vector<1x2xf32>
    %36 = vector.broadcast %35 : vector<1x2xf32> to vector<16x2xf32>
    %37 = arith.addf %34, %36 : vector<16x2xf32>
    %c0_26 = arith.constant 0 : index
    %c0_27 = arith.constant 0 : index
    %38 = vector.load %arg10[%c0_26, %c0_27] : memref<16x2xf32, #tpu.memory_space<vmem>>, vector<16x2xf32>
    tpu.vector_store %arg10[%c0_26, %c0_27], %37 {strides = array<i32>} : memref<16x2xf32, #tpu.memory_space<vmem>>, vector<16x2xf32>,
    return
  }
  func.func @transform_0(%arg0: i32) -> (i32, i32) {
    %c0_i32 = arith.constant 0 : i32
    %c0_i32_0 = arith.constant 0 : i32
    return %arg0, %c0_i32 : i32, i32
  }
  func.func @transform_1(%arg0: i32) -> (i32, i32) {
    %c0_i32 = arith.constant 0 : i32
    %c0_i32_0 = arith.constant 0 : i32
    return %arg0, %c0_i32 : i32, i32
  }
  func.func @transform_2(%arg0: i32) -> (i32, i32) {
    %c0_i32 = arith.constant 0 : i32
    %c0_i32_0 = arith.constant 0 : i32
    %c0_i32_1 = arith.constant 0 : i32
    return %c0_i32, %c0_i32_0 : i32, i32
  }
  func.func @transform_3(%arg0: i32) -> (i32, i32) {
    %c0_i32 = arith.constant 0 : i32
    %c0_i32_0 = arith.constant 0 : i32
    %c0_i32_1 = arith.constant 0 : i32
    return %c0_i32, %c0_i32_0 : i32, i32
  }
  func.func @transform_4(%arg0: i32) -> (i32, i32) {
    %c0_i32 = arith.constant 0 : i32
    %c0_i32_0 = arith.constant 0 : i32
    %c0_i32_1 = arith.constant 0 : i32
    return %c0_i32, %c0_i32_0 : i32, i32
  }
  func.func @transform_5(%arg0: i32) -> (i32, i32) {
    %c0_i32 = arith.constant 0 : i32
    %c0_i32_0 = arith.constant 0 : i32
    %c0_i32_1 = arith.constant 0 : i32
    return %c0_i32, %c0_i32_0 : i32, i32
  }
  func.func @transform_6(%arg0: i32) -> (i32, i32) {
    %c0_i32 = arith.constant 0 : i32
    %c0_i32_0 = arith.constant 0 : i32
    %c0_i32_1 = arith.constant 0 : i32
    return %c0_i32, %c0_i32_0 : i32, i32
  }
  func.func @transform_7(%arg0: i32) -> (i32, i32) {
    %c0_i32 = arith.constant 0 : i32
    %c0_i32_0 = arith.constant 0 : i32
    %c0_i32_1 = arith.constant 0 : i32
    return %c0_i32, %c0_i32_0 : i32, i32
  }
  func.func @transform_8(%arg0: i32) -> (i32, i32) {
    %c0_i32 = arith.constant 0 : i32
    %c0_i32_0 = arith.constant 0 : i32
    %c0_i32_1 = arith.constant 0 : i32
    return %c0_i32, %c0_i32_0 : i32, i32
  }
  func.func @transform_9(%arg0: i32) -> (i32, i32) {
    %c0_i32 = arith.constant 0 : i32
    %c0_i32_0 = arith.constant 0 : i32
    return %arg0, %c0_i32 : i32, i32
  }
}

module attributes {stable_mosaic.version = 11 : i64} {
  func.func @ntp_head_kernel(%arg0: i32, %arg1: memref<16x32xbf16, #tpu.memory_space<vmem>>, %arg2: memref<16x32xbf16, #tpu.memory_space<vmem>>, %arg3: memref<32x32xbf16, #tpu.memory_space<vmem>>, %arg4: memref<32x32xbf16, #tpu.memory_space<vmem>>, %arg5: memref<1x32xf32, #tpu.memory_space<vmem>>, %arg6: memref<32x16xbf16, #tpu.memory_space<vmem>>, %arg7: memref<1x16xf32, #tpu.memory_space<vmem>>, %arg8: memref<16x2xbf16, #tpu.memory_space<vmem>>, %arg9: memref<1x2xf32, #tpu.memory_space<vmem>>, %arg10: memref<16x2xf32, #tpu.memory_space<vmem>>) attributes {dimension_semantics = [#tpu.dimension_semantics<parallel>], iteration_bounds = array<i64: 1>, scalar_prefetch = 0 : i64, scratch_operands = 0 : i64, tpu.core_type = #tpu.core_type<tc>, window_params = [{transform_indices = @transform_0, window_bounds = array<i64: 16, 32>}, {transform_indices = @transform_1, window_bounds = array<i64: 16, 32>}, {pipeline_mode = #tpu.pipeline_mode<synchronous>, transform_indices = @transform_2, window_bounds = array<i64: 32, 32>}, {pipeline_mode = #tpu.pipeline_mode<synchronous>, transform_indices = @transform_3, window_bounds = array<i64: 32, 32>}, {pipeline_mode = #tpu.pipeline_mode<synchronous>, transform_indices = @transform_4, window_bounds = array<i64: 1, 32>}, {pipeline_mode = #tpu.pipeline_mode<synchronous>, transform_indices = @transform_5, window_bounds = array<i64: 32, 16>}, {pipeline_mode = #tpu.pipeline_mode<synchronous>, transform_indices = @transform_6, window_bounds = array<i64: 1, 16>}, {pipeline_mode = #tpu.pipeline_mode<synchronous>, transform_indices = @transform_7, window_bounds = array<i64: 16, 2>}, {pipeline_mode = #tpu.pipeline_mode<synchronous>, transform_indices = @transform_8, window_bounds = array<i64: 1, 2>}, {transform_indices = @transform_9, window_bounds = array<i64: 16, 2>}]} {
    %c0 = arith.constant 0 : index
    %c0_0 = arith.constant 0 : index
    %0 = vector.load %arg1[%c0, %c0_0] : memref<16x32xbf16, #tpu.memory_space<vmem>>, vector<16x32xbf16>
    %c0_1 = arith.constant 0 : index
    %c0_2 = arith.constant 0 : index
    %1 = vector.load %arg3[%c0_1, %c0_2] : memref<32x32xbf16, #tpu.memory_space<vmem>>, vector<32x32xbf16>
    %cst = arith.constant dense<0.000000e+00> : vector<16x32xf32>
    %2 = tpu.matmul %0, %1, %cst {dimension_numbers = #tpu.dot_dimension_numbers<[1], [0], [0], [1], [0, 0, 1, 1], [], []>} : vector<16x32xbf16>, vector<32x32xbf16>, vector<16x32xf32> -> vector<16x32xf32>
    %c0_3 = arith.constant 0 : index
    %c0_4 = arith.constant 0 : index
    %3 = vector.load %arg2[%c0_3, %c0_4] : memref<16x32xbf16, #tpu.memory_space<vmem>>, vector<16x32xbf16>
    %c0_5 = arith.constant 0 : index
    %c0_6 = arith.constant 0 : index
    %4 = vector.load %arg4[%c0_5, %c0_6] : memref<32x32xbf16, #tpu.memory_space<vmem>>, vector<32x32xbf16>
    %cst_7 = arith.constant dense<0.000000e+00> : vector<16x32xf32>
    %5 = tpu.matmul %3, %4, %cst_7 {dimension_numbers = #tpu.dot_dimension_numbers<[1], [0], [0], [1], [0, 0, 1, 1], [], []>} : vector<16x32xbf16>, vector<32x32xbf16>, vector<16x32xf32> -> vector<16x32xf32>
    %6 = arith.addf %2, %5 : vector<16x32xf32>
    %c0_8 = arith.constant 0 : index
    %c0_9 = arith.constant 0 : index
    %7 = vector.load %arg5[%c0_8, %c0_9] : memref<1x32xf32, #tpu.memory_space<vmem>>, vector<1x32xf32>
    %8 = vector.broadcast %7 : vector<1x32xf32> to vector<16x32xf32>
    %9 = arith.addf %6, %8 : vector<16x32xf32>
    %cst_10 = arith.constant 5.000000e-01 : f32
    %10 = vector.broadcast %cst_10 : f32 to vector<16x32xf32>
    %11 = arith.mulf %10, %9 : vector<16x32xf32>
    %cst_11 = arith.constant 0.707106769 : f32
    %12 = vector.broadcast %cst_11 : f32 to vector<16x32xf32>
    %13 = arith.mulf %9, %12 : vector<16x32xf32>
    %14 = math.erf %13 : vector<16x32xf32>
    %cst_12 = arith.constant 1.000000e+00 : f32
    %15 = vector.broadcast %cst_12 : f32 to vector<16x32xf32>
    %16 = arith.addf %15, %14 : vector<16x32xf32>
    %17 = arith.mulf %11, %16 : vector<16x32xf32>
    %18 = arith.truncf %17 : vector<16x32xf32> to vector<16x32xbf16>
    %c0_13 = arith.constant 0 : index
    %c0_14 = arith.constant 0 : index
    %19 = vector.load %arg6[%c0_13, %c0_14] : memref<32x16xbf16, #tpu.memory_space<vmem>>, vector<32x16xbf16>
    %cst_15 = arith.constant dense<0.000000e+00> : vector<16x16xf32>
    %20 = tpu.matmul %18, %19, %cst_15 {dimension_numbers = #tpu.dot_dimension_numbers<[1], [0], [0], [1], [0, 0, 1, 1], [], []>} : vector<16x32xbf16>, vector<32x16xbf16>, vector<16x16xf32> -> vector<16x16xf32>
    %c0_16 = arith.constant 0 : index
    %c0_17 = arith.constant 0 : index
    %21 = vector.load %arg7[%c0_16, %c0_17] : memref<1x16xf32, #tpu.memory_space<vmem>>, vector<1x16xf32>
    %22 = vector.broadcast %21 : vector<1x16xf32> to vector<16x16xf32>
    %23 = arith.addf %20, %22 : vector<16x16xf32>
    %cst_18 = arith.constant 5.000000e-01 : f32
    %24 = vector.broadcast %cst_18 : f32 to vector<16x16xf32>
    %25 = arith.mulf %24, %23 : vector<16x16xf32>
    %cst_19 = arith.constant 0.707106769 : f32
    %26 = vector.broadcast %cst_19 : f32 to vector<16x16xf32>
    %27 = arith.mulf %23, %26 : vector<16x16xf32>
    %28 = math.erf %27 : vector<16x16xf32>
    %cst_20 = arith.constant 1.000000e+00 : f32
    %29 = vector.broadcast %cst_20 : f32 to vector<16x16xf32>
    %30 = arith.addf %29, %28 : vector<16x16xf32>
    %31 = arith.mulf %25, %30 : vector<16x16xf32>
    %32 = arith.truncf %31 : vector<16x16xf32> to vector<16x16xbf16>
    %c0_21 = arith.constant 0 : index
    %c0_22 = arith.constant 0 : index
    %33 = vector.load %arg8[%c0_21, %c0_22] : memref<16x2xbf16, #tpu.memory_space<vmem>>, vector<16x2xbf16>
    %cst_23 = arith.constant dense<0.000000e+00> : vector<16x2xf32>
    %34 = tpu.matmul %32, %33, %cst_23 {dimension_numbers = #tpu.dot_dimension_numbers<[1], [0], [0], [1], [0, 0, 1, 1], [], []>} : vector<16x16xbf16>, vector<16x2xbf16>, vector<16x2xf32> -> vector<16x2xf32>
    %c0_24 = arith.constant 0 : index
    %c0_25 = arith.constant 0 : index
    %35 = vector.load %arg9[%c0_24, %c0_25] : memref<1x2xf32, #tpu.memory_space<vmem>>, vector<1x2xf32>
    %36 = vector.broadcast %35 : vector<1x2xf32> to vector<16x2xf32>
    %37 = arith.addf %34, %36 : vector<16x2xf32>
    %c0_26 = arith.constant 0 : index
    %c0_27 = arith.constant 0 : index
    %38 = vector.load %arg10[%c0_26, %c0_27] : memref<16x2xf32, #tpu.memory_space<vmem>>, vector<16x2xf32>
    tpu.vector_store %arg10[%c0_26, %c0_27], %37 {strides = array<i32>} : memref<16x2xf32, #tpu.memory_space<vmem>>, vector<16x2xf32>,
    return
  }
  func.func @transform_0(%arg0: i32) -> (i32, i32) {
    %c0_i32 = arith.constant 0 : i32
    %c0_i32_0 = arith.constant 0 : i32
    return %arg0, %c0_i32 : i32, i32
  }
  func.func @transform_1(%arg0: i32) -> (i32, i32) {
    %c0_i32 = arith.constant 0 : i32
    %c0_i32_0 = arith.constant 0 : i32
    return %arg0, %c0_i32 : i32, i32
  }
  func.func @transform_2(%arg0: i32) -> (i32, i32) {
    %c0_i32 = arith.constant 0 : i32
    %c0_i32_0 = arith.constant 0 : i32
    %c0_i32_1 = arith.constant 0 : i32
    return %c0_i32, %c0_i32_0 : i32, i32
  }
  func.func @transform_3(%arg0: i32) -> (i32, i32) {
    %c0_i32 = arith.constant 0 : i32
    %c0_i32_0 = arith.constant 0 : i32
    %c0_i32_1 = arith.constant 0 : i32
    return %c0_i32, %c0_i32_0 : i32, i32
  }
  func.func @transform_4(%arg0: i32) -> (i32, i32) {
    %c0_i32 = arith.constant 0 : i32
    %c0_i32_0 = arith.constant 0 : i32
    %c0_i32_1 = arith.constant 0 : i32
    return %c0_i32, %c0_i32_0 : i32, i32
  }
  func.func @transform_5(%arg0: i32) -> (i32, i32) {
    %c0_i32 = arith.constant 0 : i32
    %c0_i32_0 = arith.constant 0 : i32
    %c0_i32_1 = arith.constant 0 : i32
    return %c0_i32, %c0_i32_0 : i32, i32
  }
  func.func @transform_6(%arg0: i32) -> (i32, i32) {
    %c0_i32 = arith.constant 0 : i32
    %c0_i32_0 = arith.constant 0 : i32
    %c0_i32_1 = arith.constant 0 : i32
    return %c0_i32, %c0_i32_0 : i32, i32
  }
  func.func @transform_7(%arg0: i32) -> (i32, i32) {
    %c0_i32 = arith.constant 0 : i32
    %c0_i32_0 = arith.constant 0 : i32
    %c0_i32_1 = arith.constant 0 : i32
    return %c0_i32, %c0_i32_0 : i32, i32
  }
  func.func @transform_8(%arg0: i32) -> (i32, i32) {
    %c0_i32 = arith.constant 0 : i32
    %c0_i32_0 = arith.constant 0 : i32
    %c0_i32_1 = arith.constant 0 : i32
    return %c0_i32, %c0_i32_0 : i32, i32
  }
  func.func @transform_9(%arg0: i32) -> (i32, i32) {
    %c0_i32 = arith.constant 0 : i32
    %c0_i32_0 = arith.constant 0 : i32
    return %arg0, %c0_i32 : i32, i32
  }
}

</mosaic_0001>

<llo_original>
// kernel: tpu_custom_call.1
$region0: #{tpu_custom_call.1}
  #allocation0 [shape = 'u32[]', space=smem, size = 0x4, offset = 0x4, fixed_abs, tag = 'smem constant byte address 0x4 - core index']
  #allocation1 [shape = 'u32[144,128]{1,0:T(1,128)}', space=vmem, size = 0x12000, scoped, tag = 'internal scratch']
  %s0 = inlined_call_operand.hbm [shape: bf16[16,32], index: 0, kind: input, shape index: {}]
  %s1 = inlined_call_operand.hbm [shape: bf16[16,32], index: 1, kind: input, shape index: {}]
  %s2 = inlined_call_operand.vmem [shape: bf16[32,32], index: 2, kind: input, shape index: {}]
  %s3 = inlined_call_operand.vmem [shape: bf16[32,32], index: 3, kind: input, shape index: {}]
  %s4 = inlined_call_operand.vmem [shape: f32[1,32], index: 4, kind: input, shape index: {}]
  %s5 = inlined_call_operand.vmem [shape: bf16[32,16], index: 5, kind: input, shape index: {}]
  %s6 = inlined_call_operand.vmem [shape: f32[1,16], index: 6, kind: input, shape index: {}]
  %s7 = inlined_call_operand.vmem [shape: bf16[16,2], index: 7, kind: input, shape index: {}]
  %s8 = inlined_call_operand.vmem [shape: f32[1,2], index: 8, kind: input, shape index: {}]
  %s9 = inlined_call_operand.vmem [shape: f32[16,2], index: 9, kind: output, shape index: {}]
  %s10 = sld [smem:[#allocation0]]
  $region54: #{tpu_custom_call.1} parent=0
    _
  %s12 = ssub.s32 1, %s10
  %s13 = scalar_select 0, %s12, %s10
  $region1: #{tpu_custom_call.1} parent=0
    #allocation2 [shape = 'u8[4096]{0}', space=vmem, size = 0x1000, scoped, tag = 'input window, operand 0, single buffered']
    #allocation3 [shape = 's32[1]{0}', space=sflag, size = 0x4, scoped, tag = 'scoped memory for tpu_custom_call.1']
    #allocation4 [shape = 'u8[4096]{0}', space=vmem, size = 0x1000, scoped, tag = 'input window, operand 1, single buffered']
    #allocation5 [shape = 's32[1]{0}', space=sflag, size = 0x4, scoped, tag = 'scoped memory for tpu_custom_call.1']
    %14 = vsyncpa [#allocation3], 0
    %15 = vsyncpa [#allocation5], 0
    // Predicated region
    $region2: #{tpu_custom_call.1} parent=1 // pred_check
      _
    $region3: #{tpu_custom_call.1} parent=1 // pred_check_branch
      %17 = sbr.rel (0) target = $region5
    $region4: #{tpu_custom_call.1} parent=1 // pred_region
      %s19 = ssub.s32 128, 128
      %20 = vsyncadd [#allocation3], %s19
      %s21 = sshll.u32 [#allocation2], 4
      %s22 = int_to_ptr.vmem [resolvable:$true] %s21
      %27 = dma.hbm_to_vmem [thread:$0]  %s0, 128, %s22, [#allocation3], 64, 64, 4
    $region5: #{tpu_custom_call.1} parent=1 // pred_fallthru
      _
    // Predicated region
    $region6: #{tpu_custom_call.1} parent=1 // pred_check
      _
    $region7: #{tpu_custom_call.1} parent=1 // pred_check_branch
      %29 = sbr.rel (0) target = $region9
    $region8: #{tpu_custom_call.1} parent=1 // pred_region
      %s31 = ssub.s32 128, 128
      %32 = vsyncadd [#allocation5], %s31
      %s33 = sshll.u32 [#allocation4], 4
      %s34 = int_to_ptr.vmem [resolvable:$true] %s33
      %39 = dma.hbm_to_vmem [thread:$0]  %s1, 128, %s34, [#allocation5], 64, 64, 4
    $region9: #{tpu_custom_call.1} parent=1 // pred_fallthru
      _
    // Predicated region
    $region10: #{tpu_custom_call.1} parent=1 // pred_check
      _
    $region11: #{tpu_custom_call.1} parent=1 // pred_check_branch
      %41 = sbr.rel (0) target = $region13
    $region12: #{tpu_custom_call.1} parent=1 // pred_region
      _
    $region13: #{tpu_custom_call.1} parent=1 // pred_fallthru
      _
    // Predicated region
    $region14: #{tpu_custom_call.1} parent=1 // pred_check
      _
    $region15: #{tpu_custom_call.1} parent=1 // pred_check_branch
      %43 = sbr.rel (0) target = $region17
    $region16: #{tpu_custom_call.1} parent=1 // pred_region
      _
    $region17: #{tpu_custom_call.1} parent=1 // pred_fallthru
      _
    // Predicated region
    $region18: #{tpu_custom_call.1} parent=1 // pred_check
      _
    $region19: #{tpu_custom_call.1} parent=1 // pred_check_branch
      %45 = sbr.rel (0) target = $region21
    $region20: #{tpu_custom_call.1} parent=1 // pred_region
      _
    $region21: #{tpu_custom_call.1} parent=1 // pred_fallthru
      _
    // Predicated region
    $region22: #{tpu_custom_call.1} parent=1 // pred_check
      _
    $region23: #{tpu_custom_call.1} parent=1 // pred_check_branch
      %47 = sbr.rel (0) target = $region25
    $region24: #{tpu_custom_call.1} parent=1 // pred_region
      _
    $region25: #{tpu_custom_call.1} parent=1 // pred_fallthru
      _
    // Predicated region
    $region26: #{tpu_custom_call.1} parent=1 // pred_check
      _
    $region27: #{tpu_custom_call.1} parent=1 // pred_check_branch
      %49 = sbr.rel (0) target = $region29
    $region28: #{tpu_custom_call.1} parent=1 // pred_region
      _
    $region29: #{tpu_custom_call.1} parent=1 // pred_fallthru
      _
    // Predicated region
    $region30: #{tpu_custom_call.1} parent=1 // pred_check
      _
    $region31: #{tpu_custom_call.1} parent=1 // pred_check_branch
      %51 = sbr.rel (0) target = $region33
    $region32: #{tpu_custom_call.1} parent=1 // pred_region
      _
    $region33: #{tpu_custom_call.1} parent=1 // pred_fallthru
      _
    // Predicated region
    $region34: #{tpu_custom_call.1} parent=1 // pred_check
      _
    $region35: #{tpu_custom_call.1} parent=1 // pred_check_branch
      %53 = sbr.rel (0) target = $region37
    $region36: #{tpu_custom_call.1} parent=1 // pred_region
      _
    $region37: #{tpu_custom_call.1} parent=1 // pred_fallthru
      _
    // Predicated region
    $region38: #{tpu_custom_call.1} parent=1 // pred_check
      _
    $region39: #{tpu_custom_call.1} parent=1 // pred_check_branch
      %55 = sbr.rel (0) target = $region41
    $region40: #{tpu_custom_call.1} parent=1 // pred_region
      %56 = dma.done [#allocation3], 128
    $region41: #{tpu_custom_call.1} parent=1 // pred_fallthru
      _
    // Predicated region
    $region42: #{tpu_custom_call.1} parent=1 // pred_check
      _
    $region43: #{tpu_custom_call.1} parent=1 // pred_check_branch
      %58 = sbr.rel (0) target = $region45
    $region44: #{tpu_custom_call.1} parent=1 // pred_region
      %59 = dma.done [#allocation5], 128
    $region45: #{tpu_custom_call.1} parent=1 // pred_fallthru
      _
    %v61 = vld [vmem:[#allocation2] sm:$0xf]
    %v62 = vld [vmem:[#allocation2 + $0x4] sm:$0xf]
    %v63 = vld [vmem:[%s2] sm:$0xf]
    %v64 = vld [vmem:[%s2 + $0x4] sm:$0xf]
    %v65 = vld [vmem:[%s2 + $0x8] sm:$0xf]
    %v66 = vld [vmem:[%s2 + $0xc] sm:$0xf]
    %v67 = vld [vmem:[#allocation4] sm:$0xf]
    %v68 = vld [vmem:[#allocation4 + $0x4] sm:$0xf]
    %v69 = vld [vmem:[%s3] sm:$0xf]
    %v70 = vld [vmem:[%s3 + $0x4] sm:$0xf]
    %v71 = vld [vmem:[%s3 + $0x8] sm:$0xf]
    %v72 = vld [vmem:[%s3 + $0xc] sm:$0xf]
    %v75 = vunpack.c.l.b16 %v67
    %v76 = vunpack.c.l.b16 %v68
    %v77 = vpack.c.b16 %v76, %v75
    %v82 = vunpack.c.l.b16 %v69
    %v83 = vunpack.c.l.b16 %v70
    %v84 = vunpack.c.l.b16 %v71
    %v85 = vunpack.c.l.b16 %v72
    %v86 = vpack.c.b16 %v83, %v82
    %v87 = vpack.c.b16 %v85, %v84
    %vm90 = vcmask 261120
    %v92 = vsel %vm90, %v77, 0
    %94 = vmatprep.subr.bf16.mxu0 0
    %95 = vmatpush1.bf16.msra.mxu0 %v86
    %96 = vmatprep.subr.bf16.mxu0 0
    %97 = vmatpush1.bf16.msra.mxu0 %v87
    %98 = vmatprep.subr.bf16.mxu0 0
    %99 = vmatpush1.bf16.msra.mxu0 0
    %100 = vmatprep.subr.bf16.mxu0 0
    %101 = vmatpush1.bf16.msra.mxu0 0
    %102 = vmatprep.subr.bf16.mxu0 0
    %103 = vmatpush1.bf16.msra.mxu0 0
    %104 = vmatprep.subr.bf16.mxu0 0
    %105 = vmatpush1.bf16.msra.mxu0 0
    %106 = vmatprep.subr.bf16.mxu0 0
    %107 = vmatpush1.bf16.msra.mxu0 0
    %108 = vmatprep.subr.bf16.mxu0 0
    %109 = vmatpush1.bf16.msra.mxu0 0
    %110 = vmatprep.subr.bf16.mxu0 0
    %111 = vmatpush1.bf16.msra.mxu0 0
    %112 = vmatprep.subr.bf16.mxu0 0
    %113 = vmatpush1.bf16.msra.mxu0 0
    %114 = vmatprep.subr.bf16.mxu0 0
    %115 = vmatpush1.bf16.msra.mxu0 0
    %116 = vmatprep.subr.bf16.mxu0 0
    %117 = vmatpush1.bf16.msra.mxu0 0
    %118 = vmatprep.subr.bf16.mxu0 0
    %119 = vmatpush1.bf16.msra.mxu0 0
    %120 = vmatprep.subr.bf16.mxu0 0
    %121 = vmatpush1.bf16.msra.mxu0 0
    %122 = vmatprep.subr.bf16.mxu0 0
    %123 = vmatpush1.bf16.msra.mxu0 0
    %124 = vmatprep.subr.bf16.mxu0 0
    %125 = vmatpush1.bf16.msra.mxu0 0
    %126 = vmatprep.mubr.bf16.mxu0 0
    %127 = vmatmul.mubr.bf16.gmra.mrb[0].mxu0 %v92
    %v128 = vpop.f32.mrb[0].mxu0
    %v129 = vadd.f32 0.0, %v128
    %v130 = vpop.f32.mrb[0].mxu0
    %v131 = vpop.f32.mrb[0].mxu0
    %v132 = vadd.f32 0.0, %v131
    %v133 = vpop.f32.mrb[0].mxu0
    %134 = vdwg.mxu0
    %v137 = vunpack.c.l.b16 %v61
    %v138 = vunpack.c.l.b16 %v62
    %v139 = vpack.c.b16 %v138, %v137
    %v144 = vunpack.c.l.b16 %v63
    %v145 = vunpack.c.l.b16 %v64
    %v146 = vunpack.c.l.b16 %v65
    %v147 = vunpack.c.l.b16 %v66
    %v148 = vpack.c.b16 %v145, %v144
    %v149 = vpack.c.b16 %v147, %v146
    %v153 = vsel %vm90, %v139, 0
    %155 = vmatprep.subr.bf16.mxu0 0
    %156 = vmatpush1.bf16.msra.mxu0 %v148
    %157 = vmatprep.subr.bf16.mxu0 0
    %158 = vmatpush1.bf16.msra.mxu0 %v149
    %159 = vmatprep.subr.bf16.mxu0 0
    %160 = vmatpush1.bf16.msra.mxu0 0
    %161 = vmatprep.subr.bf16.mxu0 0
    %162 = vmatpush1.bf16.msra.mxu0 0
    %163 = vmatprep.subr.bf16.mxu0 0
    %164 = vmatpush1.bf16.msra.mxu0 0
    %165 = vmatprep.subr.bf16.mxu0 0
    %166 = vmatpush1.bf16.msra.mxu0 0
    %167 = vmatprep.subr.bf16.mxu0 0
    %168 = vmatpush1.bf16.msra.mxu0 0
    %169 = vmatprep.subr.bf16.mxu0 0
    %170 = vmatpush1.bf16.msra.mxu0 0
    %171 = vmatprep.subr.bf16.mxu0 0
    %172 = vmatpush1.bf16.msra.mxu0 0
    %173 = vmatprep.subr.bf16.mxu0 0
    %174 = vmatpush1.bf16.msra.mxu0 0
    %175 = vmatprep.subr.bf16.mxu0 0
    %176 = vmatpush1.bf16.msra.mxu0 0
    %177 = vmatprep.subr.bf16.mxu0 0
    %178 = vmatpush1.bf16.msra.mxu0 0
    %179 = vmatprep.subr.bf16.mxu0 0
    %180 = vmatpush1.bf16.msra.mxu0 0
    %181 = vmatprep.subr.bf16.mxu0 0
    %182 = vmatpush1.bf16.msra.mxu0 0
    %183 = vmatprep.subr.bf16.mxu0 0
    %184 = vmatpush1.bf16.msra.mxu0 0
    %185 = vmatprep.subr.bf16.mxu0 0
    %186 = vmatpush1.bf16.msra.mxu0 0
    %187 = vmatprep.mubr.bf16.mxu0 0
    %188 = vmatmul.mubr.bf16.gmra.mrb[0].mxu0 %v153
    %v189 = vpop.f32.mrb[0].mxu0
    %v190 = vadd.f32 %v129, %v189
    %v191 = vpop.f32.mrb[0].mxu0
    %v192 = vpop.f32.mrb[0].mxu0
    %v193 = vadd.f32 %v132, %v192
    %v194 = vpop.f32.mrb[0].mxu0
    %195 = vdwg.mxu0
    %v196 = vld [vmem:[%s4] sm:$0x1]
    %v198 = vlaneseq
    %v199 = vshrl.u32 %v198, 7
    %v200 = vsub.s32 0, %v199
    %v201 = vrot.slane %v196, %v200
    %v203 = vadd.f32 %v190, %v201
    %v204 = vadd.f32 %v193, %v201
    %v205 = vmul.f32 %v203, 0.5
    %v206 = vmul.f32 %v204, 0.5
    %v207 = vmul.f32 %v203, 0.70710677
    %v208 = vmul.f32 %v204, 0.70710677
    %v209 = verf.f32.pop %v207
    %v210 = verf.f32.pop %v208
    %v211 = vadd.f32 %v209, 1.0
    %v212 = vadd.f32 %v210, 1.0
    %v213 = vmul.f32 %v205, %v211
    %v214 = vmul.f32 %v206, %v212
    %v215 = vpack.c.bf16 %v214, %v213
    %v216 = vld [vmem:[%s5] sm:$0xf]
    %v217 = vld [vmem:[%s5 + $0x4] sm:$0xf]
    %v218 = vld [vmem:[%s5 + $0x8] sm:$0xf]
    %v219 = vld [vmem:[%s5 + $0xc] sm:$0xf]
    %v220 = vld [vmem:[%s6] sm:$0x1]
    %v222 = vlaneseq
    %v223 = vshrl.u32 %v222, 7
    %v224 = vsub.s32 0, %v223
    %v225 = vrot.slane %v220, %v224
    %v231 = vunpack.c.l.b16 %v216
    %v232 = vunpack.c.l.b16 %v217
    %v233 = vunpack.c.l.b16 %v218
    %v234 = vunpack.c.l.b16 %v219
    %v235 = vpack.c.b16 %v232, %v231
    %v236 = vpack.c.b16 %v234, %v233
    %v240 = vsel %vm90, %v215, 0
    %242 = vmatprep.subr.bf16.mxu0 0
    %243 = vmatpush1.bf16.msra.mxu0 %v235
    %244 = vmatprep.subr.bf16.mxu0 0
    %245 = vmatpush1.bf16.msra.mxu0 %v236
    %246 = vmatprep.subr.bf16.mxu0 0
    %247 = vmatpush1.bf16.msra.mxu0 0
    %248 = vmatprep.subr.bf16.mxu0 0
    %249 = vmatpush1.bf16.msra.mxu0 0
    %250 = vmatprep.subr.bf16.mxu0 0
    %251 = vmatpush1.bf16.msra.mxu0 0
    %252 = vmatprep.subr.bf16.mxu0 0
    %253 = vmatpush1.bf16.msra.mxu0 0
    %254 = vmatprep.subr.bf16.mxu0 0
    %255 = vmatpush1.bf16.msra.mxu0 0
    %256 = vmatprep.subr.bf16.mxu0 0
    %257 = vmatpush1.bf16.msra.mxu0 0
    %258 = vmatprep.subr.bf16.mxu0 0
    %259 = vmatpush1.bf16.msra.mxu0 0
    %260 = vmatprep.subr.bf16.mxu0 0
    %261 = vmatpush1.bf16.msra.mxu0 0
    %262 = vmatprep.subr.bf16.mxu0 0
    %263 = vmatpush1.bf16.msra.mxu0 0
    %264 = vmatprep.subr.bf16.mxu0 0
    %265 = vmatpush1.bf16.msra.mxu0 0
    %266 = vmatprep.subr.bf16.mxu0 0
    %267 = vmatpush1.bf16.msra.mxu0 0
    %268 = vmatprep.subr.bf16.mxu0 0
    %269 = vmatpush1.bf16.msra.mxu0 0
    %270 = vmatprep.subr.bf16.mxu0 0
    %271 = vmatpush1.bf16.msra.mxu0 0
    %272 = vmatprep.subr.bf16.mxu0 0
    %273 = vmatpush1.bf16.msra.mxu0 0
    %274 = vmatprep.mubr.bf16.mxu0 0
    %275 = vmatmul.mubr.bf16.gmra.mrb[0].mxu0 %v240
    %v276 = vpop.f32.mrb[0].mxu0
    %v277 = vadd.f32 %v225, %v276
    %v278 = vpop.f32.mrb[0].mxu0
    %v279 = vpop.f32.mrb[0].mxu0
    %v280 = vadd.f32 %v225, %v279
    %v281 = vpop.f32.mrb[0].mxu0
    %282 = vdwg.mxu0
    %v283 = vmul.f32 %v277, 0.5
    %v284 = vmul.f32 %v280, 0.5
    %v285 = vmul.f32 %v277, 0.70710677
    %v286 = vmul.f32 %v280, 0.70710677
    %v287 = verf.f32.pop %v285
    %v288 = verf.f32.pop %v286
    %v289 = vadd.f32 %v287, 1.0
    %v290 = vadd.f32 %v288, 1.0
    %v291 = vmul.f32 %v283, %v289
    %v292 = vmul.f32 %v284, %v290
    %v293 = vpack.c.bf16 %v292, %v291
    %v294 = vld [vmem:[%s7] sm:$0xf]
    %v295 = vld [vmem:[%s7 + $0x4] sm:$0xf]
    %v296 = vld [vmem:[%s8] sm:$0x1]
    %v298 = vlaneseq
    %v299 = vshrl.u32 %v298, 7
    %v300 = vsub.s32 0, %v299
    %v301 = vrot.slane %v296, %v300
    %v305 = vunpack.c.l.b16 %v294
    %v306 = vunpack.c.l.b16 %v295
    %v307 = vpack.c.b16 %v306, %v305
    %vm309 = vcmask 130048
    %v311 = vsel %vm309, %v293, 0
    %313 = vmatprep.subr.bf16.mxu0 0
    %314 = vmatpush1.bf16.msra.mxu0 %v307
    %315 = vmatprep.subr.bf16.mxu0 0
    %316 = vmatpush1.bf16.msra.mxu0 0
    %317 = vmatprep.subr.bf16.mxu0 0
    %318 = vmatpush1.bf16.msra.mxu0 0
    %319 = vmatprep.subr.bf16.mxu0 0
    %320 = vmatpush1.bf16.msra.mxu0 0
    %321 = vmatprep.subr.bf16.mxu0 0
    %322 = vmatpush1.bf16.msra.mxu0 0
    %323 = vmatprep.subr.bf16.mxu0 0
    %324 = vmatpush1.bf16.msra.mxu0 0
    %325 = vmatprep.subr.bf16.mxu0 0
    %326 = vmatpush1.bf16.msra.mxu0 0
    %327 = vmatprep.subr.bf16.mxu0 0
    %328 = vmatpush1.bf16.msra.mxu0 0
    %329 = vmatprep.subr.bf16.mxu0 0
    %330 = vmatpush1.bf16.msra.mxu0 0
    %331 = vmatprep.subr.bf16.mxu0 0
    %332 = vmatpush1.bf16.msra.mxu0 0
    %333 = vmatprep.subr.bf16.mxu0 0
    %334 = vmatpush1.bf16.msra.mxu0 0
    %335 = vmatprep.subr.bf16.mxu0 0
    %336 = vmatpush1.bf16.msra.mxu0 0
    %337 = vmatprep.subr.bf16.mxu0 0
    %338 = vmatpush1.bf16.msra.mxu0 0
    %339 = vmatprep.subr.bf16.mxu0 0
    %340 = vmatpush1.bf16.msra.mxu0 0
    %341 = vmatprep.subr.bf16.mxu0 0
    %342 = vmatpush1.bf16.msra.mxu0 0
    %343 = vmatprep.subr.bf16.mxu0 0
    %344 = vmatpush1.bf16.msra.mxu0 0
    %345 = vmatprep.mubr.bf16.mxu0 0
    %346 = vmatmul.mubr.bf16.gmra.mrb[0].mxu0 %v311
    %v347 = vpop.f32.mrb[0].mxu0
    %v348 = vadd.f32 %v301, %v347
    %v349 = vpop.f32.mrb[0].mxu0
    %v350 = vpop.f32.mrb[0].mxu0
    %v351 = vadd.f32 %v301, %v350
    %v352 = vpop.f32.mrb[0].mxu0
    %353 = vdwg.mxu0
    %vm354 = vcmask 15360
    %355 = vst.msk [vmem:[%s9] sm:$0xff] %vm354, %v348
    %356 = vst.msk [vmem:[%s9 + $0x8] sm:$0xff] %vm354, %v351
    // Predicated region
    $region46: #{tpu_custom_call.1} parent=1 // pred_check
      _
    $region47: #{tpu_custom_call.1} parent=1 // pred_check_branch
      %358 = sbr.rel (0) target = $region49
    $region48: #{tpu_custom_call.1} parent=1 // pred_region
      _
    $region49: #{tpu_custom_call.1} parent=1 // pred_fallthru
      _
    // Predicated region
    $region50: #{tpu_custom_call.1} parent=1 // pred_check
      _
    $region51: #{tpu_custom_call.1} parent=1 // pred_check_branch
      %360 = sbr.rel (0) target = $region53
    $region52: #{tpu_custom_call.1} parent=1 // pred_region
      _
    $region53: #{tpu_custom_call.1} parent=1 // pred_fallthru
      _
    %361 = vsyncpa [#allocation3], 1
    %362 = vsyncpa [#allocation5], 1

// kernel: tpu_custom_call.1
$region0: #{tpu_custom_call.1}
  #allocation0 [shape = 'u32[]', space=smem, size = 0x4, offset = 0x4, fixed_abs, tag = 'smem constant byte address 0x4 - core index']
  #allocation1 [shape = 'u32[144,128]{1,0:T(1,128)}', space=vmem, size = 0x12000, scoped, tag = 'internal scratch']
  %s0 = inlined_call_operand.hbm [shape: bf16[16,32], index: 0, kind: input, shape index: {}]
  %s1 = inlined_call_operand.hbm [shape: bf16[16,32], index: 1, kind: input, shape index: {}]
  %s2 = inlined_call_operand.vmem [shape: bf16[32,32], index: 2, kind: input, shape index: {}]
  %s3 = inlined_call_operand.vmem [shape: bf16[32,32], index: 3, kind: input, shape index: {}]
  %s4 = inlined_call_operand.vmem [shape: f32[1,32], index: 4, kind: input, shape index: {}]
  %s5 = inlined_call_operand.vmem [shape: bf16[32,16], index: 5, kind: input, shape index: {}]
  %s6 = inlined_call_operand.vmem [shape: f32[1,16], index: 6, kind: input, shape index: {}]
  %s7 = inlined_call_operand.vmem [shape: bf16[16,2], index: 7, kind: input, shape index: {}]
  %s8 = inlined_call_operand.vmem [shape: f32[1,2], index: 8, kind: input, shape index: {}]
  %s9 = inlined_call_operand.vmem [shape: f32[16,2], index: 9, kind: output, shape index: {}]
  %s10 = sld [smem:[#allocation0]]
  $region54: #{tpu_custom_call.1} parent=0
    _
  %s12 = ssub.s32 1, %s10
  %s13 = scalar_select 0, %s12, %s10
  $region1: #{tpu_custom_call.1} parent=0
    #allocation2 [shape = 'u8[4096]{0}', space=vmem, size = 0x1000, scoped, tag = 'input window, operand 0, single buffered']
    #allocation3 [shape = 's32[1]{0}', space=sflag, size = 0x4, scoped, tag = 'scoped memory for tpu_custom_call.1']
    #allocation4 [shape = 'u8[4096]{0}', space=vmem, size = 0x1000, scoped, tag = 'input window, operand 1, single buffered']
    #allocation5 [shape = 's32[1]{0}', space=sflag, size = 0x4, scoped, tag = 'scoped memory for tpu_custom_call.1']
    %14 = vsyncpa [#allocation3], 0
    %15 = vsyncpa [#allocation5], 0
    // Predicated region
    $region2: #{tpu_custom_call.1} parent=1 // pred_check
      _
    $region3: #{tpu_custom_call.1} parent=1 // pred_check_branch
      %17 = sbr.rel (0) target = $region5
    $region4: #{tpu_custom_call.1} parent=1 // pred_region
      %s19 = ssub.s32 128, 128
      %20 = vsyncadd [#allocation3], %s19
      %s21 = sshll.u32 [#allocation2], 4
      %s22 = int_to_ptr.vmem [resolvable:$true] %s21
      %27 = dma.hbm_to_vmem [thread:$0]  %s0, 128, %s22, [#allocation3], 64, 64, 4
    $region5: #{tpu_custom_call.1} parent=1 // pred_fallthru
      _
    // Predicated region
    $region6: #{tpu_custom_call.1} parent=1 // pred_check
      _
    $region7: #{tpu_custom_call.1} parent=1 // pred_check_branch
      %29 = sbr.rel (0) target = $region9
    $region8: #{tpu_custom_call.1} parent=1 // pred_region
      %s31 = ssub.s32 128, 128
      %32 = vsyncadd [#allocation5], %s31
      %s33 = sshll.u32 [#allocation4], 4
      %s34 = int_to_ptr.vmem [resolvable:$true] %s33
      %39 = dma.hbm_to_vmem [thread:$0]  %s1, 128, %s34, [#allocation5], 64, 64, 4
    $region9: #{tpu_custom_call.1} parent=1 // pred_fallthru
      _
    // Predicated region
    $region10: #{tpu_custom_call.1} parent=1 // pred_check
      _
    $region11: #{tpu_custom_call.1} parent=1 // pred_check_branch
      %41 = sbr.rel (0) target = $region13
    $region12: #{tpu_custom_call.1} parent=1 // pred_region
      _
    $region13: #{tpu_custom_call.1} parent=1 // pred_fallthru
      _
    // Predicated region
    $region14: #{tpu_custom_call.1} parent=1 // pred_check
      _
    $region15: #{tpu_custom_call.1} parent=1 // pred_check_branch
      %43 = sbr.rel (0) target = $region17
    $region16: #{tpu_custom_call.1} parent=1 // pred_region
      _
    $region17: #{tpu_custom_call.1} parent=1 // pred_fallthru
      _
    // Predicated region
    $region18: #{tpu_custom_call.1} parent=1 // pred_check
      _
    $region19: #{tpu_custom_call.1} parent=1 // pred_check_branch
      %45 = sbr.rel (0) target = $region21
    $region20: #{tpu_custom_call.1} parent=1 // pred_region
      _
    $region21: #{tpu_custom_call.1} parent=1 // pred_fallthru
      _
    // Predicated region
    $region22: #{tpu_custom_call.1} parent=1 // pred_check
      _
    $region23: #{tpu_custom_call.1} parent=1 // pred_check_branch
      %47 = sbr.rel (0) target = $region25
    $region24: #{tpu_custom_call.1} parent=1 // pred_region
      _
    $region25: #{tpu_custom_call.1} parent=1 // pred_fallthru
      _
    // Predicated region
    $region26: #{tpu_custom_call.1} parent=1 // pred_check
      _
    $region27: #{tpu_custom_call.1} parent=1 // pred_check_branch
      %49 = sbr.rel (0) target = $region29
    $region28: #{tpu_custom_call.1} parent=1 // pred_region
      _
    $region29: #{tpu_custom_call.1} parent=1 // pred_fallthru
      _
    // Predicated region
    $region30: #{tpu_custom_call.1} parent=1 // pred_check
      _
    $region31: #{tpu_custom_call.1} parent=1 // pred_check_branch
      %51 = sbr.rel (0) target = $region33
    $region32: #{tpu_custom_call.1} parent=1 // pred_region
      _
    $region33: #{tpu_custom_call.1} parent=1 // pred_fallthru
      _
    // Predicated region
    $region34: #{tpu_custom_call.1} parent=1 // pred_check
      _
    $region35: #{tpu_custom_call.1} parent=1 // pred_check_branch
      %53 = sbr.rel (0) target = $region37
    $region36: #{tpu_custom_call.1} parent=1 // pred_region
      _
    $region37: #{tpu_custom_call.1} parent=1 // pred_fallthru
      _
    // Predicated region
    $region38: #{tpu_custom_call.1} parent=1 // pred_check
      _
    $region39: #{tpu_custom_call.1} parent=1 // pred_check_branch
      %55 = sbr.rel (0) target = $region41
    $region40: #{tpu_custom_call.1} parent=1 // pred_region
      %56 = dma.done [#allocation3], 128
    $region41: #{tpu_custom_call.1} parent=1 // pred_fallthru
      _
    // Predicated region
    $region42: #{tpu_custom_call.1} parent=1 // pred_check
      _
    $region43: #{tpu_custom_call.1} parent=1 // pred_check_branch
      %58 = sbr.rel (0) target = $region45
    $region44: #{tpu_custom_call.1} parent=1 // pred_region
      %59 = dma.done [#allocation5], 128
    $region45: #{tpu_custom_call.1} parent=1 // pred_fallthru
      _
    %v61 = vld [vmem:[#allocation2] sm:$0xf]
    %v62 = vld [vmem:[#allocation2 + $0x4] sm:$0xf]
    %v63 = vld [vmem:[%s2] sm:$0xf]
    %v64 = vld [vmem:[%s2 + $0x4] sm:$0xf]
    %v65 = vld [vmem:[%s2 + $0x8] sm:$0xf]
    %v66 = vld [vmem:[%s2 + $0xc] sm:$0xf]
    %v67 = vld [vmem:[#allocation4] sm:$0xf]
    %v68 = vld [vmem:[#allocation4 + $0x4] sm:$0xf]
    %v69 = vld [vmem:[%s3] sm:$0xf]
    %v70 = vld [vmem:[%s3 + $0x4] sm:$0xf]
    %v71 = vld [vmem:[%s3 + $0x8] sm:$0xf]
    %v72 = vld [vmem:[%s3 + $0xc] sm:$0xf]
    %v75 = vunpack.c.l.b16 %v67
    %v76 = vunpack.c.l.b16 %v68
    %v77 = vpack.c.b16 %v76, %v75
    %v82 = vunpack.c.l.b16 %v69
    %v83 = vunpack.c.l.b16 %v70
    %v84 = vunpack.c.l.b16 %v71
    %v85 = vunpack.c.l.b16 %v72
    %v86 = vpack.c.b16 %v83, %v82
    %v87 = vpack.c.b16 %v85, %v84
    %vm90 = vcmask 261120
    %v92 = vsel %vm90, %v77, 0
    %94 = vmatprep.subr.bf16.mxu0 0
    %95 = vmatpush1.bf16.msra.mxu0 %v86
    %96 = vmatprep.subr.bf16.mxu0 0
    %97 = vmatpush1.bf16.msra.mxu0 %v87
    %98 = vmatprep.subr.bf16.mxu0 0
    %99 = vmatpush1.bf16.msra.mxu0 0
    %100 = vmatprep.subr.bf16.mxu0 0
    %101 = vmatpush1.bf16.msra.mxu0 0
    %102 = vmatprep.subr.bf16.mxu0 0
    %103 = vmatpush1.bf16.msra.mxu0 0
    %104 = vmatprep.subr.bf16.mxu0 0
    %105 = vmatpush1.bf16.msra.mxu0 0
    %106 = vmatprep.subr.bf16.mxu0 0
    %107 = vmatpush1.bf16.msra.mxu0 0
    %108 = vmatprep.subr.bf16.mxu0 0
    %109 = vmatpush1.bf16.msra.mxu0 0
    %110 = vmatprep.subr.bf16.mxu0 0
    %111 = vmatpush1.bf16.msra.mxu0 0
    %112 = vmatprep.subr.bf16.mxu0 0
    %113 = vmatpush1.bf16.msra.mxu0 0
    %114 = vmatprep.subr.bf16.mxu0 0
    %115 = vmatpush1.bf16.msra.mxu0 0
    %116 = vmatprep.subr.bf16.mxu0 0
    %117 = vmatpush1.bf16.msra.mxu0 0
    %118 = vmatprep.subr.bf16.mxu0 0
    %119 = vmatpush1.bf16.msra.mxu0 0
    %120 = vmatprep.subr.bf16.mxu0 0
    %121 = vmatpush1.bf16.msra.mxu0 0
    %122 = vmatprep.subr.bf16.mxu0 0
    %123 = vmatpush1.bf16.msra.mxu0 0
    %124 = vmatprep.subr.bf16.mxu0 0
    %125 = vmatpush1.bf16.msra.mxu0 0
    %126 = vmatprep.mubr.bf16.mxu0 0
    %127 = vmatmul.mubr.bf16.gmra.mrb[0].mxu0 %v92
    %v128 = vpop.f32.mrb[0].mxu0
    %v129 = vadd.f32 0.0, %v128
    %v130 = vpop.f32.mrb[0].mxu0
    %v131 = vpop.f32.mrb[0].mxu0
    %v132 = vadd.f32 0.0, %v131
    %v133 = vpop.f32.mrb[0].mxu0
    %134 = vdwg.mxu0
    %v137 = vunpack.c.l.b16 %v61
    %v138 = vunpack.c.l.b16 %v62
    %v139 = vpack.c.b16 %v138, %v137
    %v144 = vunpack.c.l.b16 %v63
    %v145 = vunpack.c.l.b16 %v64
    %v146 = vunpack.c.l.b16 %v65
    %v147 = vunpack.c.l.b16 %v66
    %v148 = vpack.c.b16 %v145, %v144
    %v149 = vpack.c.b16 %v147, %v146
    %v153 = vsel %vm90, %v139, 0
    %155 = vmatprep.subr.bf16.mxu0 0
    %156 = vmatpush1.bf16.msra.mxu0 %v148
    %157 = vmatprep.subr.bf16.mxu0 0
    %158 = vmatpush1.bf16.msra.mxu0 %v149
    %159 = vmatprep.subr.bf16.mxu0 0
    %160 = vmatpush1.bf16.msra.mxu0 0
    %161 = vmatprep.subr.bf16.mxu0 0
    %162 = vmatpush1.bf16.msra.mxu0 0
    %163 = vmatprep.subr.bf16.mxu0 0
    %164 = vmatpush1.bf16.msra.mxu0 0
    %165 = vmatprep.subr.bf16.mxu0 0
    %166 = vmatpush1.bf16.msra.mxu0 0
    %167 = vmatprep.subr.bf16.mxu0 0
    %168 = vmatpush1.bf16.msra.mxu0 0
    %169 = vmatprep.subr.bf16.mxu0 0
    %170 = vmatpush1.bf16.msra.mxu0 0
    %171 = vmatprep.subr.bf16.mxu0 0
    %172 = vmatpush1.bf16.msra.mxu0 0
    %173 = vmatprep.subr.bf16.mxu0 0
    %174 = vmatpush1.bf16.msra.mxu0 0
    %175 = vmatprep.subr.bf16.mxu0 0
    %176 = vmatpush1.bf16.msra.mxu0 0
    %177 = vmatprep.subr.bf16.mxu0 0
    %178 = vmatpush1.bf16.msra.mxu0 0
    %179 = vmatprep.subr.bf16.mxu0 0
    %180 = vmatpush1.bf16.msra.mxu0 0
    %181 = vmatprep.subr.bf16.mxu0 0
    %182 = vmatpush1.bf16.msra.mxu0 0
    %183 = vmatprep.subr.bf16.mxu0 0
    %184 = vmatpush1.bf16.msra.mxu0 0
    %185 = vmatprep.subr.bf16.mxu0 0
    %186 = vmatpush1.bf16.msra.mxu0 0
    %187 = vmatprep.mubr.bf16.mxu0 0
    %188 = vmatmul.mubr.bf16.gmra.mrb[0].mxu0 %v153
    %v189 = vpop.f32.mrb[0].mxu0
    %v190 = vadd.f32 %v129, %v189
    %v191 = vpop.f32.mrb[0].mxu0
    %v192 = vpop.f32.mrb[0].mxu0
    %v193 = vadd.f32 %v132, %v192
    %v194 = vpop.f32.mrb[0].mxu0
    %195 = vdwg.mxu0
    %v196 = vld [vmem:[%s4] sm:$0x1]
    %v198 = vlaneseq
    %v199 = vshrl.u32 %v198, 7
    %v200 = vsub.s32 0, %v199
    %v201 = vrot.slane %v196, %v200
    %v203 = vadd.f32 %v190, %v201
    %v204 = vadd.f32 %v193, %v201
    %v205 = vmul.f32 %v203, 0.5
    %v206 = vmul.f32 %v204, 0.5
    %v207 = vmul.f32 %v203, 0.70710677
    %v208 = vmul.f32 %v204, 0.70710677
    %v209 = verf.f32.pop %v207
    %v210 = verf.f32.pop %v208
    %v211 = vadd.f32 %v209, 1.0
    %v212 = vadd.f32 %v210, 1.0
    %v213 = vmul.f32 %v205, %v211
    %v214 = vmul.f32 %v206, %v212
    %v215 = vpack.c.bf16 %v214, %v213
    %v216 = vld [vmem:[%s5] sm:$0xf]
    %v217 = vld [vmem:[%s5 + $0x4] sm:$0xf]
    %v218 = vld [vmem:[%s5 + $0x8] sm:$0xf]
    %v219 = vld [vmem:[%s5 + $0xc] sm:$0xf]
    %v220 = vld [vmem:[%s6] sm:$0x1]
    %v222 = vlaneseq
    %v223 = vshrl.u32 %v222, 7
    %v224 = vsub.s32 0, %v223
    %v225 = vrot.slane %v220, %v224
    %v231 = vunpack.c.l.b16 %v216
    %v232 = vunpack.c.l.b16 %v217
    %v233 = vunpack.c.l.b16 %v218
    %v234 = vunpack.c.l.b16 %v219
    %v235 = vpack.c.b16 %v232, %v231
    %v236 = vpack.c.b16 %v234, %v233
    %v240 = vsel %vm90, %v215, 0
    %242 = vmatprep.subr.bf16.mxu0 0
    %243 = vmatpush1.bf16.msra.mxu0 %v235
    %244 = vmatprep.subr.bf16.mxu0 0
    %245 = vmatpush1.bf16.msra.mxu0 %v236
    %246 = vmatprep.subr.bf16.mxu0 0
    %247 = vmatpush1.bf16.msra.mxu0 0
    %248 = vmatprep.subr.bf16.mxu0 0
    %249 = vmatpush1.bf16.msra.mxu0 0
    %250 = vmatprep.subr.bf16.mxu0 0
    %251 = vmatpush1.bf16.msra.mxu0 0
    %252 = vmatprep.subr.bf16.mxu0 0
    %253 = vmatpush1.bf16.msra.mxu0 0
    %254 = vmatprep.subr.bf16.mxu0 0
    %255 = vmatpush1.bf16.msra.mxu0 0
    %256 = vmatprep.subr.bf16.mxu0 0
    %257 = vmatpush1.bf16.msra.mxu0 0
    %258 = vmatprep.subr.bf16.mxu0 0
    %259 = vmatpush1.bf16.msra.mxu0 0
    %260 = vmatprep.subr.bf16.mxu0 0
    %261 = vmatpush1.bf16.msra.mxu0 0
    %262 = vmatprep.subr.bf16.mxu0 0
    %263 = vmatpush1.bf16.msra.mxu0 0
    %264 = vmatprep.subr.bf16.mxu0 0
    %265 = vmatpush1.bf16.msra.mxu0 0
    %266 = vmatprep.subr.bf16.mxu0 0
    %267 = vmatpush1.bf16.msra.mxu0 0
    %268 = vmatprep.subr.bf16.mxu0 0
    %269 = vmatpush1.bf16.msra.mxu0 0
    %270 = vmatprep.subr.bf16.mxu0 0
    %271 = vmatpush1.bf16.msra.mxu0 0
    %272 = vmatprep.subr.bf16.mxu0 0
    %273 = vmatpush1.bf16.msra.mxu0 0
    %274 = vmatprep.mubr.bf16.mxu0 0
    %275 = vmatmul.mubr.bf16.gmra.mrb[0].mxu0 %v240
    %v276 = vpop.f32.mrb[0].mxu0
    %v277 = vadd.f32 %v225, %v276
    %v278 = vpop.f32.mrb[0].mxu0
    %v279 = vpop.f32.mrb[0].mxu0
    %v280 = vadd.f32 %v225, %v279
    %v281 = vpop.f32.mrb[0].mxu0
    %282 = vdwg.mxu0
    %v283 = vmul.f32 %v277, 0.5
    %v284 = vmul.f32 %v280, 0.5
    %v285 = vmul.f32 %v277, 0.70710677
    %v286 = vmul.f32 %v280, 0.70710677
    %v287 = verf.f32.pop %v285
    %v288 = verf.f32.pop %v286
    %v289 = vadd.f32 %v287, 1.0
    %v290 = vadd.f32 %v288, 1.0
    %v291 = vmul.f32 %v283, %v289
    %v292 = vmul.f32 %v284, %v290
    %v293 = vpack.c.bf16 %v292, %v291
    %v294 = vld [vmem:[%s7] sm:$0xf]
    %v295 = vld [vmem:[%s7 + $0x4] sm:$0xf]
    %v296 = vld [vmem:[%s8] sm:$0x1]
    %v298 = vlaneseq
    %v299 = vshrl.u32 %v298, 7
    %v300 = vsub.s32 0, %v299
    %v301 = vrot.slane %v296, %v300
    %v305 = vunpack.c.l.b16 %v294
    %v306 = vunpack.c.l.b16 %v295
    %v307 = vpack.c.b16 %v306, %v305
    %vm309 = vcmask 130048
    %v311 = vsel %vm309, %v293, 0
    %313 = vmatprep.subr.bf16.mxu0 0
    %314 = vmatpush1.bf16.msra.mxu0 %v307
    %315 = vmatprep.subr.bf16.mxu0 0
    %316 = vmatpush1.bf16.msra.mxu0 0
    %317 = vmatprep.subr.bf16.mxu0 0
    %318 = vmatpush1.bf16.msra.mxu0 0
    %319 = vmatprep.subr.bf16.mxu0 0
    %320 = vmatpush1.bf16.msra.mxu0 0
    %321 = vmatprep.subr.bf16.mxu0 0
    %322 = vmatpush1.bf16.msra.mxu0 0
    %323 = vmatprep.subr.bf16.mxu0 0
    %324 = vmatpush1.bf16.msra.mxu0 0
    %325 = vmatprep.subr.bf16.mxu0 0
    %326 = vmatpush1.bf16.msra.mxu0 0
    %327 = vmatprep.subr.bf16.mxu0 0
    %328 = vmatpush1.bf16.msra.mxu0 0
    %329 = vmatprep.subr.bf16.mxu0 0
    %330 = vmatpush1.bf16.msra.mxu0 0
    %331 = vmatprep.subr.bf16.mxu0 0
    %332 = vmatpush1.bf16.msra.mxu0 0
    %333 = vmatprep.subr.bf16.mxu0 0
    %334 = vmatpush1.bf16.msra.mxu0 0
    %335 = vmatprep.subr.bf16.mxu0 0
    %336 = vmatpush1.bf16.msra.mxu0 0
    %337 = vmatprep.subr.bf16.mxu0 0
    %338 = vmatpush1.bf16.msra.mxu0 0
    %339 = vmatprep.subr.bf16.mxu0 0
    %340 = vmatpush1.bf16.msra.mxu0 0
    %341 = vmatprep.subr.bf16.mxu0 0
    %342 = vmatpush1.bf16.msra.mxu0 0
    %343 = vmatprep.subr.bf16.mxu0 0
    %344 = vmatpush1.bf16.msra.mxu0 0
    %345 = vmatprep.mubr.bf16.mxu0 0
    %346 = vmatmul.mubr.bf16.gmra.mrb[0].mxu0 %v311
    %v347 = vpop.f32.mrb[0].mxu0
    %v348 = vadd.f32 %v301, %v347
    %v349 = vpop.f32.mrb[0].mxu0
    %v350 = vpop.f32.mrb[0].mxu0
    %v351 = vadd.f32 %v301, %v350
    %v352 = vpop.f32.mrb[0].mxu0
    %353 = vdwg.mxu0
    %vm354 = vcmask 15360
    %355 = vst.msk [vmem:[%s9] sm:$0xff] %vm354, %v348
    %356 = vst.msk [vmem:[%s9 + $0x8] sm:$0xff] %vm354, %v351
    // Predicated region
    $region46: #{tpu_custom_call.1} parent=1 // pred_check
      _
    $region47: #{tpu_custom_call.1} parent=1 // pred_check_branch
      %358 = sbr.rel (0) target = $region49
    $region48: #{tpu_custom_call.1} parent=1 // pred_region
      _
    $region49: #{tpu_custom_call.1} parent=1 // pred_fallthru
      _
    // Predicated region
    $region50: #{tpu_custom_call.1} parent=1 // pred_check
      _
    $region51: #{tpu_custom_call.1} parent=1 // pred_check_branch
      %360 = sbr.rel (0) target = $region53
    $region52: #{tpu_custom_call.1} parent=1 // pred_region
      _
    $region53: #{tpu_custom_call.1} parent=1 // pred_fallthru
      _
    %361 = vsyncpa [#allocation3], 1
    %362 = vsyncpa [#allocation5], 1

</llo_original>
